<compile_context>
chip_gen: v5e
topology: v5e:2x2
jax: 0.10.0
libtpu: 0.0.40
codegen_flags: <defaults>
</compile_context>

<pallas_src>
import jax
import jax.numpy as jnp
from jax.experimental import pallas as pl
from jax.experimental.pallas import tpu as pltpu


# ----------------------------------------------------------------------------
# Primary path: zero-byte-movement identity (aliased, ANY memory space, no-op).
# ----------------------------------------------------------------------------
def _noop_identity_kernel(x_ref, o_ref):
    # Empty nn.Sequential => output IS the (aliased) input buffer; nothing to do.
    del x_ref
    pltpu.touch(o_ref)  # anchor the aliased output; prevents DCE / reordering


def _noop_identity(x: jax.Array) -> jax.Array:
    return pl.pallas_call(
        _noop_identity_kernel,
        out_shape=jax.ShapeDtypeStruct(x.shape, x.dtype),
        in_specs=[pl.BlockSpec(memory_space=pl.ANY)],   # no auto-DMA: stays in HBM
        out_specs=pl.BlockSpec(memory_space=pl.ANY),    # no output DMA either
        input_output_aliases={0: 0},                    # output buffer == input buffer
        compiler_params=pltpu.CompilerParams(has_side_effects=True),
    )(x)


# ----------------------------------------------------------------------------
# Fallback path: lane-dense, row-tiled, aliased copy (known-good design,
# with the perf-review fixes applied).  Only used if the no-op path is
# unavailable on this jax/libtpu build.
# ----------------------------------------------------------------------------
def _copy_kernel(x_ref, o_ref):
    o_ref[...] = x_ref[...]


_TILE_BYTES = 4 * 1024 * 1024  # per block; in+out double-buffered -> <=16 MiB resident (v7x-safe)


def _tiled_copy(x: jax.Array) -> jax.Array:
    orig_shape = x.shape
    total = x.size

    # Lane-dense 2D layout: lane width a multiple of 128 -> unmasked vst, full vregs.
    lane = None
    for cand in (512, 256, 128):
        if total % cand == 0:
            lane = cand
            break
    if lane is None:
        # Odd (non-128-multiple) total: single full-extent block (small arrays only).
        lane = total
    rows = total // lane
    x2d = x.reshape(rows, lane)

    max_rows = max(8, _TILE_BYTES // (lane * x.dtype.itemsize))
    if rows % 8 == 0 and rows > 8:
        block_rows = min(rows, max_rows)
        block_rows -= block_rows % 8               # keep (8, 128)-divisible blocks
        if block_rows >= rows:
            # Force grid >= 2 so v7x's two TensorCores both issue DMAs.
            half = rows // 2
            block_rows = max(8, half - (half % 8))
    else:
        block_rows = rows                          # full-extent block

    grid = (pl.cdiv(rows, block_rows),)
    spec = pl.BlockSpec((block_rows, lane), lambda i: (i, 0))

    out2d = pl.pallas_call(
        _copy_kernel,
        out_shape=jax.ShapeDtypeStruct(x2d.shape, x2d.dtype),
        grid=grid,
        in_specs=[spec],
        out_specs=spec,
        input_output_aliases={0: 0},
        compiler_params=pltpu.CompilerParams(
            dimension_semantics=("parallel",),     # shard the copy across v7x's 2 TCs
            vmem_limit_bytes=32 * 1024 * 1024,
        ),
    )(x2d)
    return out2d.reshape(orig_shape)


# ----------------------------------------------------------------------------
# Dispatcher: probe the no-op path once (compile + bit-exact), cache the choice.
# ----------------------------------------------------------------------------
_USE_NOOP = None


def _noop_path_works() -> bool:
    global _USE_NOOP
    if _USE_NOOP is None:
        try:
            probe = jnp.arange(8 * 128, dtype=jnp.float32).reshape(8, 128)
            out = _noop_identity(probe)
            jax.block_until_ready(out)
            _USE_NOOP = bool(jnp.array_equal(out, probe))
        except Exception:
            _USE_NOOP = False
    return _USE_NOOP


def attn_net_forward(x: jax.Array) -> jax.Array:
    """Pallas implementation of AttnNet.forward (empty nn.Sequential == identity)."""
    if x.size == 0:
        return x  # guard: avoids zero-sized grids / divide-by-zero
    if _noop_path_works():
        return _noop_identity(x)
    return _tiled_copy(x)


if __name__ == "__main__":
    key = jax.random.PRNGKey(0)
    # NCHW input, consistent with how the PyTorch module would be fed.
    x = jax.random.normal(key, (2, 4, 16, 16), dtype=jnp.float32)

    y = attn_net_forward(x)
    jax.block_until_ready(y)

    # Forward of an empty nn.Sequential is exactly the identity.
    assert y.shape == x.shape and y.dtype == x.dtype
    assert bool(jnp.array_equal(y, x))

    print("KERNEL_OK")
</pallas_src>

<mosaic_0001>
module attributes {stable_mosaic.version = 11 : i64} {
  func.func @_noop_identity_kernel(%arg0: memref<8x128xf32, #tpu.memory_space<any>>, %arg1: memref<8x128xf32, #tpu.memory_space<any>>) attributes {dimension_semantics = [], scalar_prefetch = 0 : i64, scratch_operands = 0 : i64, tpu.core_type = #tpu.core_type<tc>} {
    return
  }
}

module attributes {stable_mosaic.version = 11 : i64} {
  func.func @_copy_kernel(%arg0: i32, %arg1: memref<4x512xf32, #tpu.memory_space<vmem>>, %arg2: memref<4x512xf32, #tpu.memory_space<vmem>>) attributes {dimension_semantics = [#tpu.dimension_semantics<parallel>], iteration_bounds = array<i64: 1>, scalar_prefetch = 0 : i64, scratch_operands = 0 : i64, tpu.core_type = #tpu.core_type<tc>, window_params = [{transform_indices = @transform_0, window_bounds = array<i64: 4, 512>}, {transform_indices = @transform_1, window_bounds = array<i64: 4, 512>}]} {
    %c0 = arith.constant 0 : index
    %c0_0 = arith.constant 0 : index
    %0 = vector.load %arg1[%c0, %c0_0] : memref<4x512xf32, #tpu.memory_space<vmem>>, vector<4x512xf32>
    %c0_1 = arith.constant 0 : index
    %c0_2 = arith.constant 0 : index
    %1 = vector.load %arg2[%c0_1, %c0_2] : memref<4x512xf32, #tpu.memory_space<vmem>>, vector<4x512xf32>
    tpu.vector_store %arg2[%c0_1, %c0_2], %0 {strides = array<i32>} : memref<4x512xf32, #tpu.memory_space<vmem>>, vector<4x512xf32>,
    return
  }
  func.func @transform_0(%arg0: i32) -> (i32, i32) {
    %c0_i32 = arith.constant 0 : i32
    %c0_i32_0 = arith.constant 0 : i32
    return %arg0, %c0_i32 : i32, i32
  }
  func.func @transform_1(%arg0: i32) -> (i32, i32) {
    %c0_i32 = arith.constant 0 : i32
    %c0_i32_0 = arith.constant 0 : i32
    return %arg0, %c0_i32 : i32, i32
  }
}

</mosaic_0001>

<llo_original>
// kernel: tpu_custom_call.1
$region0: #{tpu_custom_call.1}
  #allocation0 [shape = 'u32[]', space=smem, size = 0x4, offset = 0x4, fixed_abs, tag = 'smem constant byte address 0x4 - core index']
  #allocation1 [shape = 'u32[72,128]{1,0:T(1,128)}', space=vmem, size = 0x9000, scoped, tag = 'internal scratch']
  %s0 = inlined_call_operand.hbm [shape: f32[8,128], index: 0, kind: input, shape index: {}, may-alias: {0,1}]
  %s1 = inlined_call_operand.hbm [shape: f32[8,128], index: 1, kind: output, shape index: {}, may-alias: {0,1}]
  %s2 = sld [smem:[#allocation0]]
  $region2: #{tpu_custom_call.1} parent=0
    _
  %s4 = ssub.s32 1, %s2
  %s5 = scalar_select 0, %s4, %s2

// kernel: tpu_custom_call.1
$region0: #{tpu_custom_call.1}
  #allocation0 [shape = 'u32[]', space=smem, size = 0x4, offset = 0x4, fixed_abs, tag = 'smem constant byte address 0x4 - core index']
  #allocation1 [shape = 'u32[72,128]{1,0:T(1,128)}', space=vmem, size = 0x9000, scoped, tag = 'internal scratch']
  %s0 = inlined_call_operand.hbm [shape: f32[4,512], index: 0, kind: input, shape index: {}, may-alias: {0,1}]
  %s1 = inlined_call_operand.hbm [shape: f32[4,512], index: 1, kind: output, shape index: {}, may-alias: {0,1}]
  %s2 = sld [smem:[#allocation0]]
  $region18: #{tpu_custom_call.1} parent=0
    _
  %s4 = ssub.s32 1, %s2
  %s5 = scalar_select 0, %s4, %s2
  $region1: #{tpu_custom_call.1} parent=0
    #allocation2 [shape = 'u8[8192]{0}', space=vmem, size = 0x2000, scoped, tag = 'input window, operand 0, single buffered']
    #allocation3 [shape = 's32[1]{0}', space=sflag, size = 0x4, scoped, tag = 'scoped memory for tpu_custom_call.1']
    #allocation4 [shape = 's32[1]{0}', space=sflag, size = 0x4, scoped, tag = 'scoped memory for tpu_custom_call.1']
    #allocation5 [shape = 'u8[8192]{0}', space=vmem, size = 0x2000, scoped, tag = 'output window, operand 0, single buffered']
    %6 = vsyncpa [#allocation3], 0
    %7 = vsyncpa [#allocation4], 0
    // Predicated region
    $region2: #{tpu_custom_call.1} parent=1 // pred_check
      _
    $region3: #{tpu_custom_call.1} parent=1 // pred_check_branch
      %9 = sbr.rel (0) target = $region5
    $region4: #{tpu_custom_call.1} parent=1 // pred_region
      %11 = vsyncadd [#allocation3], 0
      %s13 = sshll.u32 %s0, 4
      %s14 = int_to_ptr.hbm [resolvable:$true] %s13
      %s15 = sshll.u32 [#allocation2], 4
      %s16 = int_to_ptr.vmem [resolvable:$true] %s15
      %18 = dma.hbm_to_vmem [thread:$0]  %s14, 256, %s16, [#allocation3]
    $region5: #{tpu_custom_call.1} parent=1 // pred_fallthru
      _
    // Predicated region
    $region6: #{tpu_custom_call.1} parent=1 // pred_check
      _
    $region7: #{tpu_custom_call.1} parent=1 // pred_check_branch
      %20 = sbr.rel (0) target = $region9
    $region8: #{tpu_custom_call.1} parent=1 // pred_region
      %22 = dma.done [#allocation3], 256
    $region9: #{tpu_custom_call.1} parent=1 // pred_fallthru
      _
    %v23 = vld [vmem:[#allocation2] sm:$0xff]
    %v24 = vld [vmem:[#allocation2 + $0x8] sm:$0xff]
    %25 = vst [vmem:[#allocation5] sm:$0xff] %v23
    %26 = vst [vmem:[#allocation5 + $0x8] sm:$0xff] %v24
    // Predicated region
    $region10: #{tpu_custom_call.1} parent=1 // pred_check
      _
    $region11: #{tpu_custom_call.1} parent=1 // pred_check_branch
      %28 = sbr.rel (0) target = $region13
    $region12: #{tpu_custom_call.1} parent=1 // pred_region
      %30 = vsyncadd [#allocation4], 0
      %s32 = sshll.u32 [#allocation5], 4
      %s33 = int_to_ptr.vmem [resolvable:$true] %s32
      %s34 = sshll.u32 %s1, 4
      %s35 = int_to_ptr.hbm [resolvable:$true] %s34
      %37 = dma.vmem_to_hbm [thread:$0]  %s33, 256, %s35, [#allocation4]
    $region13: #{tpu_custom_call.1} parent=1 // pred_fallthru
      _
    // Predicated region
    $region14: #{tpu_custom_call.1} parent=1 // pred_check
      _
    $region15: #{tpu_custom_call.1} parent=1 // pred_check_branch
      %39 = sbr.rel (0) target = $region17
    $region16: #{tpu_custom_call.1} parent=1 // pred_region
      %41 = dma.done [#allocation4], 256
    $region17: #{tpu_custom_call.1} parent=1 // pred_fallthru
      _
    %42 = vsyncpa [#allocation3], 1
    %43 = vsyncpa [#allocation4], 1

</llo_original>
